<compile_context>
chip_gen: v7x
topology: tpu7x:2x2x1
jax: 0.10.0
libtpu: 0.0.40
codegen_flags: <defaults>
</compile_context>

<pallas_src>
import math
from functools import partial

import jax
import jax.numpy as jnp
from jax.experimental import pallas as pl
from jax.experimental.pallas import tpu as pltpu


def titanic_kernel(x_ref, w1_ref, b1_ref, w2c_ref, b2_ref, o_ref):
    # x_ref : (F, TB)   batch on the lane axis
    # w1_ref: (H, F)    b1_ref : (H, 1)
    # w2c_ref: (H, 1)   (column view of layer2.weight)   b2_ref: (1, 1)
    # o_ref : (1, TB)
    x = x_ref[...]

    # ---- Layer 1 on the MXU (otherwise-idle slot): (H,F) @ (F,TB) -> (H,TB) ----
    h = jnp.dot(w1_ref[...], x, preferred_element_type=jnp.float32)
    h = jnp.maximum(h + b1_ref[...], 0.0)            # bias lane-broadcast + ReLU (VPU)

    # ---- Layer 2: dense multiply (VPU) + sublane reduction (XLU) ----------------
    z = jnp.sum(w2c_ref[...] * h, axis=0, keepdims=True) + b2_ref[...]   # (1, TB)

    o_ref[...] = jax.nn.sigmoid(z).astype(o_ref.dtype)                   # EUP


@partial(jax.jit, static_argnames=("tb",))
def titanic_forward(x, w1, b1, w2, b2, *, tb=32768):
    """x: (B, F); w1: (8, F); b1: (8,); w2: (1, 8); b2: (1,)  (PyTorch layouts)."""
    B, F = x.shape
    H = w1.shape[0]

    # Batch on the lane axis.  The transpose can be fused into the pallas_call input
    # DMA via allow_input_fusion, avoiding an extra HBM round-trip over x.
    xt = x.astype(jnp.float32).T                     # (F, B)

    w1f = w1.astype(jnp.float32)                     # (H, F)
    b1f = b1.astype(jnp.float32).reshape(H, 1)       # (H, 1)
    w2c = w2.astype(jnp.float32).reshape(H, 1)       # (H, 1) == layer2.weight column
    b2f = b2.astype(jnp.float32).reshape(1, 1)       # (1, 1)

    # Tile selection: single block when the batch fits, otherwise lane-aligned
    # (multiple-of-128) tiles with a ragged, masked last block -- no padding pass.
    if B <= tb:
        tb = B                                       # block dims == full array dims
    else:
        tb = max(128, (tb // 128) * 128)
    grid = (pl.cdiv(B, tb),)
    # TODO(synk): on v7x, cap tb so the grid has >= 2 (even) steps per chip so both
    # TensorCores get work (or use pltpu.CORE_PARALLEL); not tunable without knowing
    # the deployment batch size.

    flops = (2 * F * H + 4 * H + 2) * B
    bytes_accessed = 4 * ((F + 1) * B + H * F + 2 * H + 1)

    out = pl.pallas_call(
        titanic_kernel,
        out_shape=jax.ShapeDtypeStruct((1, B), jnp.float32),
        grid=grid,
        in_specs=[
            pl.BlockSpec((F, tb), lambda i: (0, i)),   # x tile, pipelined over batch
            pl.BlockSpec((H, F), lambda i: (0, 0)),    # weights stay resident
            pl.BlockSpec((H, 1), lambda i: (0, 0)),
            pl.BlockSpec((H, 1), lambda i: (0, 0)),
            pl.BlockSpec((1, 1), lambda i: (0, 0)),
        ],
        out_specs=pl.BlockSpec((1, tb), lambda i: (0, i)),
        compiler_params=pltpu.CompilerParams(
            dimension_semantics=("parallel",),
            # allow XLA to fuse the x transpose (input 0) into the kernel's input DMA
            allow_input_fusion=[True, False, False, False, False],
        ),
        cost_estimate=pl.CostEstimate(
            flops=flops, transcendentals=B, bytes_accessed=bytes_accessed),
    )(xt, w1f, b1f, w2c, b2f)

    # (1, B) -> (B, 1) is a pure metadata reshape (same row-major order).
    return out.reshape(B, 1)


def init_params(key, input_size: int):
    """Deterministic init mirroring the PyTorch module's __init__."""
    k1, k2 = jax.random.split(key)

    # layer1: kaiming_uniform_(a=sqrt(5)) on weight of shape (8, input_size)
    #   gain = sqrt(2 / (1 + a^2)) = sqrt(1/3); bound = gain * sqrt(3 / fan_in)
    fan_in1 = input_size
    gain1 = math.sqrt(2.0 / (1.0 + 5.0))
    bound1 = gain1 * math.sqrt(3.0 / fan_in1)
    w1 = jax.random.uniform(k1, (8, input_size), jnp.float32, -bound1, bound1)
    b1 = jnp.full((8,), 0.1, dtype=jnp.float32)

    # layer2: xavier_uniform_(gain=1.0) on weight of shape (1, 8)
    fan_in2, fan_out2 = 8, 1
    bound2 = 1.0 * math.sqrt(6.0 / (fan_in2 + fan_out2))
    w2 = jax.random.uniform(k2, (1, 8), jnp.float32, -bound2, bound2)
    b2 = jnp.full((1,), 0.1, dtype=jnp.float32)

    return w1, b1, w2, b2


def _reference(x, w1, b1, w2, b2):
    # Plain JAX reference (same math as the PyTorch forward).  HIGHEST precision so
    # the reference dot is exact f32 regardless of the platform's default.
    hp = jax.lax.Precision.HIGHEST
    h = jnp.maximum(jnp.dot(x, w1.T, precision=hp) + b1, 0.0)
    return jax.nn.sigmoid(jnp.dot(h, w2.T, precision=hp) + b2)


if __name__ == "__main__":
    key = jax.random.PRNGKey(0)
    k_x, k_x2, k_p = jax.random.split(key, 3)

    input_size = 8       # Titanic feature count (small, fixed in-script)
    batch = 8

    x = jax.random.normal(k_x, (batch, input_size), dtype=jnp.float32)
    w1, b1, w2, b2 = init_params(k_p, input_size)

    # Round test inputs to bf16-representable values so the MXU layer-1 dot is exact
    # even if the hardware uses bf16-pass arithmetic for f32 operands; this keeps a
    # tight tolerance in the self-check without changing the kernel's f32 semantics.
    x = x.astype(jnp.bfloat16).astype(jnp.float32)
    w1 = w1.astype(jnp.bfloat16).astype(jnp.float32)
    w2 = w2.astype(jnp.bfloat16).astype(jnp.float32)

    # --- small single-block run ------------------------------------------------
    out = titanic_forward(x, w1, b1, w2, b2)
    out = jax.block_until_ready(out)
    y_ref = _reference(x, w1, b1, w2, b2)
    assert out.shape == (batch, 1)
    assert jnp.allclose(out, y_ref, atol=3e-5, rtol=1e-5)

    # --- multi-step grid with a ragged (masked) last block ----------------------
    batch2 = 300
    x2 = jax.random.normal(k_x2, (batch2, input_size), dtype=jnp.float32)
    x2 = x2.astype(jnp.bfloat16).astype(jnp.float32)
    out2 = titanic_forward(x2, w1, b1, w2, b2, tb=128)   # grid=3, last block ragged
    out2 = jax.block_until_ready(out2)
    y_ref2 = _reference(x2, w1, b1, w2, b2)
    assert out2.shape == (batch2, 1)
    assert jnp.allclose(out2, y_ref2, atol=3e-5, rtol=1e-5)

    print("KERNEL_OK")
</pallas_src>

<mosaic_0001>
module attributes {stable_mosaic.version = 11 : i64} {
  func.func @titanic_kernel(%arg0: i32, %arg1: memref<8x8xf32, #tpu.memory_space<vmem>>, %arg2: memref<8x8xf32, #tpu.memory_space<vmem>>, %arg3: memref<8x1xf32, #tpu.memory_space<vmem>>, %arg4: memref<8x1xf32, #tpu.memory_space<vmem>>, %arg5: memref<1x1xf32, #tpu.memory_space<vmem>>, %arg6: memref<1x8xf32, #tpu.memory_space<vmem>>) attributes {dimension_semantics = [#tpu.dimension_semantics<parallel>], iteration_bounds = array<i64: 1>, scalar_prefetch = 0 : i64, scratch_operands = 0 : i64, tpu.core_type = #tpu.core_type<tc>, window_params = [{transform_indices = @transform_0, window_bounds = array<i64: 8, 8>}, {pipeline_mode = #tpu.pipeline_mode<synchronous>, transform_indices = @transform_1, window_bounds = array<i64: 8, 8>}, {pipeline_mode = #tpu.pipeline_mode<synchronous>, transform_indices = @transform_2, window_bounds = array<i64: 8, 1>}, {pipeline_mode = #tpu.pipeline_mode<synchronous>, transform_indices = @transform_3, window_bounds = array<i64: 8, 1>}, {pipeline_mode = #tpu.pipeline_mode<synchronous>, transform_indices = @transform_4, window_bounds = array<i64: 1, 1>}, {transform_indices = @transform_5, window_bounds = array<i64: 1, 8>}]} {
    %c0 = arith.constant 0 : index
    %c0_0 = arith.constant 0 : index
    %0 = vector.load %arg1[%c0, %c0_0] : memref<8x8xf32, #tpu.memory_space<vmem>>, vector<8x8xf32>
    %c0_1 = arith.constant 0 : index
    %c0_2 = arith.constant 0 : index
    %1 = vector.load %arg2[%c0_1, %c0_2] : memref<8x8xf32, #tpu.memory_space<vmem>>, vector<8x8xf32>
    %cst = arith.constant dense<0.000000e+00> : vector<8x8xf32>
    %2 = tpu.matmul %1, %0, %cst {dimension_numbers = #tpu.dot_dimension_numbers<[1], [0], [0], [1], [0, 0, 1, 1], [], []>} : vector<8x8xf32>, vector<8x8xf32>, vector<8x8xf32> -> vector<8x8xf32>
    %c0_3 = arith.constant 0 : index
    %c0_4 = arith.constant 0 : index
    %3 = vector.load %arg3[%c0_3, %c0_4] : memref<8x1xf32, #tpu.memory_space<vmem>>, vector<8x1xf32>
    %4 = vector.broadcast %3 : vector<8x1xf32> to vector<8x8xf32>
    %5 = arith.addf %2, %4 : vector<8x8xf32>
    %cst_5 = arith.constant 0.000000e+00 : f32
    %6 = vector.broadcast %cst_5 : f32 to vector<8x8xf32>
    %7 = arith.maximumf %5, %6 : vector<8x8xf32>
    %c0_6 = arith.constant 0 : index
    %c0_7 = arith.constant 0 : index
    %8 = vector.load %arg4[%c0_6, %c0_7] : memref<8x1xf32, #tpu.memory_space<vmem>>, vector<8x1xf32>
    %9 = vector.broadcast %8 : vector<8x1xf32> to vector<8x8xf32>
    %10 = arith.mulf %9, %7 : vector<8x8xf32>
    %cst_8 = arith.constant dense<0.000000e+00> : vector<8xf32>
    %11 = vector.multi_reduction <add>, %10, %cst_8 [0] : vector<8x8xf32> to vector<8xf32>
    %12 = vector.shape_cast %11 : vector<8xf32> to vector<1x8xf32>
    %c0_9 = arith.constant 0 : index
    %c0_10 = arith.constant 0 : index
    %13 = vector.load %arg5[%c0_9, %c0_10] : memref<1x1xf32, #tpu.memory_space<vmem>>, vector<1x1xf32>
    %14 = vector.broadcast %13 : vector<1x1xf32> to vector<1x8xf32>
    %15 = arith.addf %12, %14 : vector<1x8xf32>
    %16 = arith.negf %15 : vector<1x8xf32>
    %17 = math.exp %16 : vector<1x8xf32>
    %cst_11 = arith.constant 1.000000e+00 : f32
    %18 = vector.broadcast %cst_11 : f32 to vector<1x8xf32>
    %19 = arith.addf %18, %17 : vector<1x8xf32>
    %20 = arith.divf %18, %19 : vector<1x8xf32>
    %c0_12 = arith.constant 0 : index
    %c0_13 = arith.constant 0 : index
    %21 = vector.load %arg6[%c0_12, %c0_13] : memref<1x8xf32, #tpu.memory_space<vmem>>, vector<1x8xf32>
    tpu.vector_store %arg6[%c0_12, %c0_13], %20 {strides = array<i32>} : memref<1x8xf32, #tpu.memory_space<vmem>>, vector<1x8xf32>,
    return
  }
  func.func @transform_0(%arg0: i32) -> (i32, i32) {
    %c0_i32 = arith.constant 0 : i32
    %c0_i32_0 = arith.constant 0 : i32
    return %c0_i32, %arg0 : i32, i32
  }
  func.func @transform_1(%arg0: i32) -> (i32, i32) {
    %c0_i32 = arith.constant 0 : i32
    %c0_i32_0 = arith.constant 0 : i32
    %c0_i32_1 = arith.constant 0 : i32
    return %c0_i32, %c0_i32_0 : i32, i32
  }
  func.func @transform_2(%arg0: i32) -> (i32, i32) {
    %c0_i32 = arith.constant 0 : i32
    %c0_i32_0 = arith.constant 0 : i32
    %c0_i32_1 = arith.constant 0 : i32
    return %c0_i32, %c0_i32_0 : i32, i32
  }
  func.func @transform_3(%arg0: i32) -> (i32, i32) {
    %c0_i32 = arith.constant 0 : i32
    %c0_i32_0 = arith.constant 0 : i32
    %c0_i32_1 = arith.constant 0 : i32
    return %c0_i32, %c0_i32_0 : i32, i32
  }
  func.func @transform_4(%arg0: i32) -> (i32, i32) {
    %c0_i32 = arith.constant 0 : i32
    %c0_i32_0 = arith.constant 0 : i32
    %c0_i32_1 = arith.constant 0 : i32
    return %c0_i32, %c0_i32_0 : i32, i32
  }
  func.func @transform_5(%arg0: i32) -> (i32, i32) {
    %c0_i32 = arith.constant 0 : i32
    %c0_i32_0 = arith.constant 0 : i32
    return %c0_i32, %arg0 : i32, i32
  }
}

</mosaic_0001>

<llo_original>
// kernel: titanic_forward.2
$region0: #{titanic_forward.2}
  #allocation0 [shape = 'u32[]', space=smem, size = 0x4, offset = 0x4, fixed_abs, tag = 'smem constant byte address 0x4 - core index']
  #allocation1 [shape = 'u32[144,128]{1,0:T(1,128)}', space=vmem, size = 0x12000, scoped, tag = 'internal scratch']
  #allocation2 [shape = 'f32[1,1]{1,0:T(1,128)S(1)}', space=vmem, size = 0x200, scoped, tag = 'scoped memory for titanic_forward.2']
  %s0 = inlined_call_operand.vmem [shape: f32[8,8], index: 0, kind: input, shape index: {}]
  %s1 = inlined_call_operand.vmem [shape: f32[8,1], index: 1, kind: input, shape index: {}]
  %s2 = inlined_call_operand.vmem [shape: f32[8,1], index: 2, kind: input, shape index: {}]
  %s3 = inlined_call_operand.<no memory space> [shape: f32[1,1], index: 3, kind: input, shape index: {}]
  %s4 = inlined_call_operand.vmem [shape: f32[8,8], index: 4, kind: input, shape index: {}]
  %s5 = inlined_call_operand.hbm [shape: f32[1,8], index: 5, kind: output, shape index: {}]
  %s6 = sld [smem:[#allocation0]]
  $region30: #{titanic_forward.2} parent=0
    _
  %s8 = ssub.s32 1, %s6
  %s9 = scalar_select 0, %s8, %s6
  %v10 = vstv %s3
  %11 = vst [vmem:[#allocation2] sm:$0x1] %v10
  $region1: #{titanic_forward.2} parent=0
    #allocation3 [shape = 'u8[512]{0}', space=vmem, size = 0x400, scoped, tag = 'output window, operand 0, single buffered']
    #allocation4 [shape = 's32[1]{0}', space=sflag, size = 0x4, scoped, tag = 'scoped memory for titanic_forward.2']
    #allocation5 [shape = 'u8[4096]{0}', space=vmem, size = 0x1000, dematerialized = true, scoped, tag = 'FusionAdapter Buffer %fusion.1 = f32[8,8]{1,0:T(8,128)} fusion(%param_4.1), kind=kLoop, calls=%fused_computation.1.clone, metadata={op_name="jit(titanic_forward)/transpose" stack_frame_id=7}']
    %12 = vsyncpa [#allocation4], 0
    // Predicated region
    $region2: #{titanic_forward.2} parent=1 // pred_check
      _
    $region3: #{titanic_forward.2} parent=1 // pred_check_branch
      %14 = sbr.rel (0) target = $region5
    $region4: #{titanic_forward.2} parent=1 // pred_region
      _
    $region5: #{titanic_forward.2} parent=1 // pred_fallthru
      _
    // Predicated region
    $region6: #{titanic_forward.2} parent=1 // pred_check
      _
    $region7: #{titanic_forward.2} parent=1 // pred_check_branch
      %16 = sbr.rel (0) target = $region9
    $region8: #{titanic_forward.2} parent=1 // pred_region
      _
    $region9: #{titanic_forward.2} parent=1 // pred_fallthru
      _
    // Predicated region
    $region10: #{titanic_forward.2} parent=1 // pred_check
      _
    $region11: #{titanic_forward.2} parent=1 // pred_check_branch
      %18 = sbr.rel (0) target = $region13
    $region12: #{titanic_forward.2} parent=1 // pred_region
      _
    $region13: #{titanic_forward.2} parent=1 // pred_fallthru
      _
    // Predicated region
    $region14: #{titanic_forward.2} parent=1 // pred_check
      _
    $region15: #{titanic_forward.2} parent=1 // pred_check_branch
      %20 = sbr.rel (0) target = $region17
    $region16: #{titanic_forward.2} parent=1 // pred_region
      _
    $region17: #{titanic_forward.2} parent=1 // pred_fallthru
      _
    // Predicated region
    $region18: #{titanic_forward.2} parent=1 // pred_check
      _
    $region19: #{titanic_forward.2} parent=1 // pred_check_branch
      %22 = sbr.rel (0) target = $region21
    $region20: #{titanic_forward.2} parent=1 // pred_region
      _
    $region21: #{titanic_forward.2} parent=1 // pred_fallthru
      _
    %v23 = vld [vmem:[%s4] sm:$0xff]
    %25 = vst [vmem:[#allocation5] sm:$0xff] %v23
    %v26 = vld [vmem:[#allocation5] sm:$0xff]
    %v27 = vld [vmem:[%s0] sm:$0xff]
    %v28 = vld [vmem:[%s1] sm:$0xff]
    %30 = vset.pattern.permute.xlu0 0
    %31 = vperm.xlu0 %30, %v28
    %v32 = vpop.permute.xlu0 %31
    %vm34 = vcmask 64512
    %v36 = vsel %vm34, %v27, 0
    %38 = vmatprep.subr.mxu0 0.0
    %39 = vmatpush1.msra.mxu0 %v26
    %40 = vmatprep.subr.mxu0 0.0
    %41 = vmatpush1.msra.mxu0 0.0
    %42 = vmatprep.subr.mxu0 0.0
    %43 = vmatpush1.msra.mxu0 0.0
    %44 = vmatprep.subr.mxu0 0.0
    %45 = vmatpush1.msra.mxu0 0.0
    %46 = vmatprep.subr.mxu0 0.0
    %47 = vmatpush1.msra.mxu0 0.0
    %48 = vmatprep.subr.mxu0 0.0
    %49 = vmatpush1.msra.mxu0 0.0
    %50 = vmatprep.subr.mxu0 0.0
    %51 = vmatpush1.msra.mxu0 0.0
    %52 = vmatprep.subr.mxu0 0.0
    %53 = vmatpush1.msra.mxu0 0.0
    %54 = vmatprep.subr.mxu0 0.0
    %55 = vmatpush1.msra.mxu0 0.0
    %56 = vmatprep.subr.mxu0 0.0
    %57 = vmatpush1.msra.mxu0 0.0
    %58 = vmatprep.subr.mxu0 0.0
    %59 = vmatpush1.msra.mxu0 0.0
    %60 = vmatprep.subr.mxu0 0.0
    %61 = vmatpush1.msra.mxu0 0.0
    %62 = vmatprep.subr.mxu0 0.0
    %63 = vmatpush1.msra.mxu0 0.0
    %64 = vmatprep.subr.mxu0 0.0
    %65 = vmatpush1.msra.mxu0 0.0
    %66 = vmatprep.subr.mxu0 0.0
    %67 = vmatpush1.msra.mxu0 0.0
    %68 = vmatprep.subr.mxu0 0.0
    %69 = vmatpush1.msra.mxu0 0.0
    %70 = vmatprep.subr.mxu0 0.0
    %71 = vmatpush1.msra.mxu0 0.0
    %72 = vmatprep.subr.mxu0 0.0
    %73 = vmatpush1.msra.mxu0 0.0
    %74 = vmatprep.subr.mxu0 0.0
    %75 = vmatpush1.msra.mxu0 0.0
    %76 = vmatprep.subr.mxu0 0.0
    %77 = vmatpush1.msra.mxu0 0.0
    %78 = vmatprep.subr.mxu0 0.0
    %79 = vmatpush1.msra.mxu0 0.0
    %80 = vmatprep.subr.mxu0 0.0
    %81 = vmatpush1.msra.mxu0 0.0
    %82 = vmatprep.subr.mxu0 0.0
    %83 = vmatpush1.msra.mxu0 0.0
    %84 = vmatprep.subr.mxu0 0.0
    %85 = vmatpush1.msra.mxu0 0.0
    %86 = vmatprep.subr.mxu0 0.0
    %87 = vmatpush1.msra.mxu0 0.0
    %88 = vmatprep.subr.mxu0 0.0
    %89 = vmatpush1.msra.mxu0 0.0
    %90 = vmatprep.subr.mxu0 0.0
    %91 = vmatpush1.msra.mxu0 0.0
    %92 = vmatprep.subr.mxu0 0.0
    %93 = vmatpush1.msra.mxu0 0.0
    %94 = vmatprep.subr.mxu0 0.0
    %95 = vmatpush1.msra.mxu0 0.0
    %96 = vmatprep.subr.mxu0 0.0
    %97 = vmatpush1.msra.mxu0 0.0
    %98 = vmatprep.subr.mxu0 0.0
    %99 = vmatpush1.msra.mxu0 0.0
    %100 = vmatprep.subr.mxu0 0.0
    %101 = vmatpush1.msra.mxu0 0.0
    %102 = vmatprep.mubr.f32.mxu0 0.0
    %103 = vmatmul.mubr.f32.gmra.mrb[0].mxu0 %v36
    %v104 = vpop.f32.mrb[0].mxu0
    %v105 = vadd.f32 %v32, %v104
    %v106 = vpop.f32.mrb[0].mxu0
    %107 = vdwg.mxu0
    %v108 = vmax.f32 %v105, 0.0
    %v109 = vld [vmem:[%s2] sm:$0xff]
    %111 = vset.pattern.permute.xlu0 0
    %112 = vperm.xlu0 %111, %v109
    %v113 = vpop.permute.xlu0 %112
    %v115 = vmul.f32 %v113, %v108
    %v116 = vsel %vm34, %v115, 0.0
    %v117 = vrot.slane %v116, 4
    %v118 = vadd.f32 %v116, %v117
    %v119 = vrot.slane %v118, 2
    %v120 = vadd.f32 %v118, %v119
    %v121 = vrot.slane %v120, 1
    %v122 = vadd.f32 %v120, %v121
    %v123 = vld [vmem:[#allocation2] sm:$0x1]
    %125 = vset.pattern.permute.xlu0 0
    %126 = vperm.xlu0 %125, %v123
    %v127 = vpop.permute.xlu0 %126
    %v129 = vlaneseq
    %v130 = vshrl.u32 %v129, 7
    %v131 = vsub.s32 0, %v130
    %v132 = vrot.slane %v127, %v131
    %v133 = vadd.f32 %v122, %v132
    %v134 = vxor.u32 %v133, 2147483648
    %v135 = vmul.f32 %v134, 1.442695
    %v136 = vpow.pop %v135
    %v137 = vadd.f32 %v136, 1.0
    %v138 = vrcp.pop %v137
    %v139 = vmul.f32 1.0, %v138
    %vm140 = vcmask 57344
    %141 = vst.msk [vmem:[#allocation3] sm:$0x1] %vm140, %v139
    // Predicated region
    $region22: #{titanic_forward.2} parent=1 // pred_check
      _
    $region23: #{titanic_forward.2} parent=1 // pred_check_branch
      %143 = sbr.rel (0) target = $region25
    $region24: #{titanic_forward.2} parent=1 // pred_region
      %s145 = ssub.s32 16, 16
      %146 = vsyncadd [#allocation4], %s145
      %s148 = sshll.u32 [#allocation3], 4
      %s149 = int_to_ptr.vmem [resolvable:$true] %s148
      %151 = dma.vmem_to_hbm [thread:$0]  %s149, 16, %s5, [#allocation4]
    $region25: #{titanic_forward.2} parent=1 // pred_fallthru
      _
    // Predicated region
    $region26: #{titanic_forward.2} parent=1 // pred_check
      _
    $region27: #{titanic_forward.2} parent=1 // pred_check_branch
      %153 = sbr.rel (0) target = $region29
    $region28: #{titanic_forward.2} parent=1 // pred_region
      %154 = dma.done [#allocation4], 16
    $region29: #{titanic_forward.2} parent=1 // pred_fallthru
      _
    %155 = vsyncpa [#allocation4], 1

</llo_original>
